<compile_context>
chip_gen: v7x
topology: tpu7x:2x2x1
jax: 0.10.0
libtpu: 0.0.40
codegen_flags: <defaults>
</compile_context>

<pallas_src>
import jax
import jax.numpy as jnp
from jax.experimental import pallas as pl
from jax.experimental.pallas import tpu as pltpu


def _round_up(n, m):
    return ((n + m - 1) // m) * m


def _tpu_generation_config():
    """Best-effort chip-generation query; conservative fallbacks if unknown."""
    kind = ""
    try:
        kind = jax.devices()[0].device_kind.lower()
    except Exception:
        pass

    if "v7" in kind:
        default_cap = 64 * 1024 * 1024
    elif "v5" in kind or "v6" in kind:
        default_cap = 128 * 1024 * 1024
    else:
        default_cap = 64 * 1024 * 1024  # conservative for unknown parts

    vmem_cap = None
    try:
        vmem_cap = int(getattr(pltpu.get_tpu_info(), "vmem_capacity_bytes", 0)) or None
    except Exception:
        vmem_cap = None
    if vmem_cap is None:
        vmem_cap = default_cap

    # ~25% headroom under physical capacity for Mosaic internals.
    vmem_limit = min((vmem_cap * 3) // 4, 100 * 1024 * 1024)

    # MXU N/K feed alignment: v5e is 4x128^2; v6e/v7x are 2x256^2.
    h_align = 256 if ("v6" in kind or "v7" in kind) else 128
    # v7x has 2 TensorCores per chip.
    num_cores = 2 if "v7" in kind else 1
    return vmem_limit, h_align, num_cores


def prepare_lwf_params(w1, b1, w2, Dx, Dy, *, h_align=128, c_align=128):
    """One-time weight prep (hoisted out of the per-call forward).

    w1: [Dx+Dy, H] (in x out), b1: [H], w2: [H, C] (in x out).
    Returns bf16 / f32 padded, MXU-aligned resident tensors plus dims.
    """
    H = w1.shape[1]
    C = w2.shape[1]

    Dx_p = _round_up(max(Dx, 1), 128)
    Dy_p = _round_up(max(Dy, 1), 128)
    H_p = _round_up(H, h_align)
    C_p = max(128, _round_up(C, c_align))

    w1x = jnp.zeros((Dx_p, H_p), jnp.bfloat16).at[:Dx, :H].set(
        w1[:Dx, :].astype(jnp.bfloat16))
    w1y = jnp.zeros((Dy_p, H_p), jnp.bfloat16).at[:Dy, :H].set(
        w1[Dx:, :].astype(jnp.bfloat16))
    b1p = jnp.zeros((1, H_p), jnp.float32).at[:, :H].set(
        b1.reshape(1, H).astype(jnp.float32))
    w2p = jnp.zeros((H_p, C_p), jnp.bfloat16).at[:H, :C].set(
        w2.astype(jnp.bfloat16))

    return dict(w1x=w1x, w1y=w1y, b1=b1p, w2=w2p,
                Dx=Dx, Dy=Dy, Dx_p=Dx_p, Dy_p=Dy_p,
                H=H, H_p=H_p, C=C, C_p=C_p)


def lwf_forward_kernel(x_ref, y_ref, w1x_ref, w1y_ref, b1_ref, w2_ref, o_ref):
    # x: [TM, Dx_p] bf16, y: [TM, Dy_p] bf16
    # w1x: [Dx_p, H_p] bf16, w1y: [Dy_p, H_p] bf16, b1: [1, H_p] f32,
    # w2: [H_p, C_p] bf16, o: [TM, C_p] f32
    # Fused concat: cat(x, y) @ w1  ==  x @ w1x + y @ w1y   (MXU, f32 acc)
    h = jnp.dot(x_ref[...], w1x_ref[...], preferred_element_type=jnp.float32)
    h = h + jnp.dot(y_ref[...], w1y_ref[...], preferred_element_type=jnp.float32)
    h = h + b1_ref[...]                      # bias-add in f32 (VPU)
    h = jnp.maximum(h, 0.0)                  # extractor nonlinearity (f32)
    # fc (bias=False), lane-dense padded output
    o_ref[...] = jnp.dot(h.astype(w2_ref.dtype), w2_ref[...],
                         preferred_element_type=jnp.float32)


def lwf_forward(x, y, params, *, max_block_b=256):
    """x: [B, ...] conv_lstm features, y: [B, ...] semantic. Returns [B, C] f32."""
    B = x.shape[0]
    Dx, Dy = params["Dx"], params["Dy"]
    Dx_p, Dy_p = params["Dx_p"], params["Dy_p"]
    H_p, C, C_p = params["H_p"], params["C"], params["C_p"]

    vmem_limit, _, num_cores = _tpu_generation_config()

    # Flatten (torch .view(B, -1)); cast matmul operands to bf16 if needed.
    xf = x.reshape(B, -1)
    yf = y.reshape(B, -1)
    assert xf.shape[1] == Dx and yf.shape[1] == Dy
    if xf.dtype != jnp.bfloat16:
        xf = xf.astype(jnp.bfloat16)
    if yf.dtype != jnp.bfloat16:
        yf = yf.astype(jnp.bfloat16)

    # Batch tile: multiple of 16 (bf16 sublane packing), up to 256; on v7x cap
    # at ~B/2 so the "parallel" batch axis spans both TensorCores.
    b16 = _round_up(B, 16)
    TM = min(max_block_b, b16)
    if num_cores > 1 and b16 > 16:
        TM = min(TM, _round_up((b16 + 1) // 2, 16))
    B_pad = _round_up(B, TM)

    # Lane / batch padding of activations (cheap; weight prep already hoisted).
    xf = jnp.pad(xf, ((0, B_pad - B), (0, Dx_p - Dx)))
    yf = jnp.pad(yf, ((0, B_pad - B), (0, Dy_p - Dy)))

    grid = (B_pad // TM,)

    bf16_b = 2
    cost = pl.CostEstimate(
        flops=2 * B_pad * (Dx_p * H_p + Dy_p * H_p + H_p * C_p),
        transcendentals=0,
        bytes_accessed=(B_pad * (Dx_p + Dy_p) * bf16_b      # activations in
                        + (Dx_p + Dy_p) * H_p * bf16_b      # w1x / w1y
                        + H_p * 4                            # bias
                        + H_p * C_p * bf16_b                 # w2
                        + B_pad * C_p * 4),                  # output
    )

    def run(single_buffer_weights):
        if single_buffer_weights:
            def res_spec(shape):
                # Constant index_map => one DMA is enough; don't double-buffer.
                return pl.BlockSpec(shape, lambda i: (0, 0),
                                    pipeline_mode=pl.Buffered(1))
        else:
            def res_spec(shape):
                return pl.BlockSpec(shape, lambda i: (0, 0))

        return pl.pallas_call(
            lwf_forward_kernel,
            out_shape=jax.ShapeDtypeStruct((B_pad, C_p), jnp.float32),
            grid_spec=pl.GridSpec(
                grid=grid,
                in_specs=[
                    pl.BlockSpec((TM, Dx_p), lambda i: (i, 0)),   # x tile
                    pl.BlockSpec((TM, Dy_p), lambda i: (i, 0)),   # y tile
                    res_spec((Dx_p, H_p)),                        # w1x resident
                    res_spec((Dy_p, H_p)),                        # w1y resident
                    res_spec((1, H_p)),                           # b1  resident
                    res_spec((H_p, C_p)),                         # w2  resident
                ],
                out_specs=pl.BlockSpec((TM, C_p), lambda i: (i, 0)),
            ),
            compiler_params=pltpu.CompilerParams(
                dimension_semantics=("parallel",),   # independent batch rows
                vmem_limit_bytes=vmem_limit,
            ),
            cost_estimate=cost,
        )(xf, yf, params["w1x"], params["w1y"], params["b1"], params["w2"])

    try:
        out = run(True)
    except Exception:
        # pipeline_mode=pl.Buffered(1) unsupported on this build: use defaults.
        out = run(False)

    # Strip batch / lane padding.
    return out[:B, :C]


if __name__ == "__main__":
    key = jax.random.PRNGKey(0)
    kx, ky, kw1, kw2 = jax.random.split(key, 4)

    # Small shapes consistent with the module's forward:
    B = 2          # batch
    Dx = 32        # conv_lstm feature dim (stand-in for 2*hidden = 2048)
    Dy = 16        # semantic dim (stand-in for semantic_dim = 300)
    H = 64         # extractor output width / fc.in_features
    C = 8          # number of classes (fc.out_features)

    x = jax.random.normal(kx, (B, Dx), dtype=jnp.float32)   # "true_features"
    y = jax.random.normal(ky, (B, Dy), dtype=jnp.float32)   # "semantic"

    D = Dx + Dy
    # Deterministic kaiming-style init (relu gain extractor, sigmoid gain fc)
    w1 = jax.random.normal(kw1, (D, H), dtype=jnp.float32) * jnp.sqrt(2.0 / D)
    b1 = jnp.zeros((H,), dtype=jnp.float32)
    w2 = jax.random.normal(kw2, (H, C), dtype=jnp.float32) * jnp.sqrt(1.0 / H)

    # One-time, generation-aware weight preparation (hoisted out of forward).
    _, h_align, _ = _tpu_generation_config()
    params = prepare_lwf_params(w1, b1, w2, Dx, Dy, h_align=h_align)

    out = lwf_forward(x, y, params)
    out = jax.block_until_ready(out)

    # Reference check in plain JAX (f32); bf16 matmul operands => loose tol.
    z = jnp.concatenate([x.reshape(B, -1), y.reshape(B, -1)], axis=-1)
    ref = jnp.maximum(z @ w1 + b1, 0.0) @ w2
    assert out.shape == (B, C)
    assert jnp.allclose(out, ref, atol=5e-2, rtol=5e-2), (
        f"max abs err {jnp.max(jnp.abs(out - ref))}")

    print("KERNEL_OK")
</pallas_src>

<mosaic_0001>
module attributes {stable_mosaic.version = 11 : i64} {
  func.func @lwf_forward_kernel(%arg0: i32, %arg1: memref<16x128xbf16, #tpu.memory_space<vmem>>, %arg2: memref<16x128xbf16, #tpu.memory_space<vmem>>, %arg3: memref<128x128xbf16, #tpu.memory_space<vmem>>, %arg4: memref<128x128xbf16, #tpu.memory_space<vmem>>, %arg5: memref<1x128xf32, #tpu.memory_space<vmem>>, %arg6: memref<128x128xbf16, #tpu.memory_space<vmem>>, %arg7: memref<16x128xf32, #tpu.memory_space<vmem>>) attributes {dimension_semantics = [#tpu.dimension_semantics<parallel>], iteration_bounds = array<i64: 1>, scalar_prefetch = 0 : i64, scratch_operands = 0 : i64, tpu.core_type = #tpu.core_type<tc>, window_params = [{transform_indices = @transform_0, window_bounds = array<i64: 16, 128>}, {transform_indices = @transform_1, window_bounds = array<i64: 16, 128>}, {pipeline_mode = #tpu.pipeline_mode<synchronous>, transform_indices = @transform_2, window_bounds = array<i64: 128, 128>}, {pipeline_mode = #tpu.pipeline_mode<synchronous>, transform_indices = @transform_3, window_bounds = array<i64: 128, 128>}, {pipeline_mode = #tpu.pipeline_mode<synchronous>, transform_indices = @transform_4, window_bounds = array<i64: 1, 128>}, {pipeline_mode = #tpu.pipeline_mode<synchronous>, transform_indices = @transform_5, window_bounds = array<i64: 128, 128>}, {transform_indices = @transform_6, window_bounds = array<i64: 16, 128>}]} {
    %c0 = arith.constant 0 : index
    %c0_0 = arith.constant 0 : index
    %0 = vector.load %arg1[%c0, %c0_0] : memref<16x128xbf16, #tpu.memory_space<vmem>>, vector<16x128xbf16>
    %c0_1 = arith.constant 0 : index
    %c0_2 = arith.constant 0 : index
    %1 = vector.load %arg3[%c0_1, %c0_2] : memref<128x128xbf16, #tpu.memory_space<vmem>>, vector<128x128xbf16>
    %cst = arith.constant dense<0.000000e+00> : vector<16x128xf32>
    %2 = tpu.matmul %0, %1, %cst {dimension_numbers = #tpu.dot_dimension_numbers<[1], [0], [0], [1], [0, 0, 1, 1], [], []>} : vector<16x128xbf16>, vector<128x128xbf16>, vector<16x128xf32> -> vector<16x128xf32>
    %c0_3 = arith.constant 0 : index
    %c0_4 = arith.constant 0 : index
    %3 = vector.load %arg2[%c0_3, %c0_4] : memref<16x128xbf16, #tpu.memory_space<vmem>>, vector<16x128xbf16>
    %c0_5 = arith.constant 0 : index
    %c0_6 = arith.constant 0 : index
    %4 = vector.load %arg4[%c0_5, %c0_6] : memref<128x128xbf16, #tpu.memory_space<vmem>>, vector<128x128xbf16>
    %cst_7 = arith.constant dense<0.000000e+00> : vector<16x128xf32>
    %5 = tpu.matmul %3, %4, %cst_7 {dimension_numbers = #tpu.dot_dimension_numbers<[1], [0], [0], [1], [0, 0, 1, 1], [], []>} : vector<16x128xbf16>, vector<128x128xbf16>, vector<16x128xf32> -> vector<16x128xf32>
    %6 = arith.addf %2, %5 : vector<16x128xf32>
    %c0_8 = arith.constant 0 : index
    %c0_9 = arith.constant 0 : index
    %7 = vector.load %arg5[%c0_8, %c0_9] : memref<1x128xf32, #tpu.memory_space<vmem>>, vector<1x128xf32>
    %8 = vector.broadcast %7 : vector<1x128xf32> to vector<16x128xf32>
    %9 = arith.addf %6, %8 : vector<16x128xf32>
    %cst_10 = arith.constant 0.000000e+00 : f32
    %10 = vector.broadcast %cst_10 : f32 to vector<16x128xf32>
    %11 = arith.maximumf %9, %10 : vector<16x128xf32>
    %12 = arith.truncf %11 : vector<16x128xf32> to vector<16x128xbf16>
    %c0_11 = arith.constant 0 : index
    %c0_12 = arith.constant 0 : index
    %13 = vector.load %arg6[%c0_11, %c0_12] : memref<128x128xbf16, #tpu.memory_space<vmem>>, vector<128x128xbf16>
    %cst_13 = arith.constant dense<0.000000e+00> : vector<16x128xf32>
    %14 = tpu.matmul %12, %13, %cst_13 {dimension_numbers = #tpu.dot_dimension_numbers<[1], [0], [0], [1], [0, 0, 1, 1], [], []>} : vector<16x128xbf16>, vector<128x128xbf16>, vector<16x128xf32> -> vector<16x128xf32>
    %c0_14 = arith.constant 0 : index
    %c0_15 = arith.constant 0 : index
    %15 = vector.load %arg7[%c0_14, %c0_15] : memref<16x128xf32, #tpu.memory_space<vmem>>, vector<16x128xf32>
    tpu.vector_store %arg7[%c0_14, %c0_15], %14 {strides = array<i32>} : memref<16x128xf32, #tpu.memory_space<vmem>>, vector<16x128xf32>,
    return
  }
  func.func @transform_0(%arg0: i32) -> (i32, i32) {
    %c0_i32 = arith.constant 0 : i32
    %c0_i32_0 = arith.constant 0 : i32
    return %arg0, %c0_i32 : i32, i32
  }
  func.func @transform_1(%arg0: i32) -> (i32, i32) {
    %c0_i32 = arith.constant 0 : i32
    %c0_i32_0 = arith.constant 0 : i32
    return %arg0, %c0_i32 : i32, i32
  }
  func.func @transform_2(%arg0: i32) -> (i32, i32) {
    %c0_i32 = arith.constant 0 : i32
    %c0_i32_0 = arith.constant 0 : i32
    %c0_i32_1 = arith.constant 0 : i32
    return %c0_i32, %c0_i32_0 : i32, i32
  }
  func.func @transform_3(%arg0: i32) -> (i32, i32) {
    %c0_i32 = arith.constant 0 : i32
    %c0_i32_0 = arith.constant 0 : i32
    %c0_i32_1 = arith.constant 0 : i32
    return %c0_i32, %c0_i32_0 : i32, i32
  }
  func.func @transform_4(%arg0: i32) -> (i32, i32) {
    %c0_i32 = arith.constant 0 : i32
    %c0_i32_0 = arith.constant 0 : i32
    %c0_i32_1 = arith.constant 0 : i32
    return %c0_i32, %c0_i32_0 : i32, i32
  }
  func.func @transform_5(%arg0: i32) -> (i32, i32) {
    %c0_i32 = arith.constant 0 : i32
    %c0_i32_0 = arith.constant 0 : i32
    %c0_i32_1 = arith.constant 0 : i32
    return %c0_i32, %c0_i32_0 : i32, i32
  }
  func.func @transform_6(%arg0: i32) -> (i32, i32) {
    %c0_i32 = arith.constant 0 : i32
    %c0_i32_0 = arith.constant 0 : i32
    return %arg0, %c0_i32 : i32, i32
  }
}

module attributes {stable_mosaic.version = 11 : i64} {
  func.func @lwf_forward_kernel(%arg0: i32, %arg1: memref<16x128xbf16, #tpu.memory_space<vmem>>, %arg2: memref<16x128xbf16, #tpu.memory_space<vmem>>, %arg3: memref<128x128xbf16, #tpu.memory_space<vmem>>, %arg4: memref<128x128xbf16, #tpu.memory_space<vmem>>, %arg5: memref<1x128xf32, #tpu.memory_space<vmem>>, %arg6: memref<128x128xbf16, #tpu.memory_space<vmem>>, %arg7: memref<16x128xf32, #tpu.memory_space<vmem>>) attributes {dimension_semantics = [#tpu.dimension_semantics<parallel>], iteration_bounds = array<i64: 1>, scalar_prefetch = 0 : i64, scratch_operands = 0 : i64, tpu.core_type = #tpu.core_type<tc>, window_params = [{transform_indices = @transform_0, window_bounds = array<i64: 16, 128>}, {transform_indices = @transform_1, window_bounds = array<i64: 16, 128>}, {pipeline_mode = #tpu.pipeline_mode<synchronous>, transform_indices = @transform_2, window_bounds = array<i64: 128, 128>}, {pipeline_mode = #tpu.pipeline_mode<synchronous>, transform_indices = @transform_3, window_bounds = array<i64: 128, 128>}, {pipeline_mode = #tpu.pipeline_mode<synchronous>, transform_indices = @transform_4, window_bounds = array<i64: 1, 128>}, {pipeline_mode = #tpu.pipeline_mode<synchronous>, transform_indices = @transform_5, window_bounds = array<i64: 128, 128>}, {transform_indices = @transform_6, window_bounds = array<i64: 16, 128>}]} {
    %c0 = arith.constant 0 : index
    %c0_0 = arith.constant 0 : index
    %0 = vector.load %arg1[%c0, %c0_0] : memref<16x128xbf16, #tpu.memory_space<vmem>>, vector<16x128xbf16>
    %c0_1 = arith.constant 0 : index
    %c0_2 = arith.constant 0 : index
    %1 = vector.load %arg3[%c0_1, %c0_2] : memref<128x128xbf16, #tpu.memory_space<vmem>>, vector<128x128xbf16>
    %cst = arith.constant dense<0.000000e+00> : vector<16x128xf32>
    %2 = tpu.matmul %0, %1, %cst {dimension_numbers = #tpu.dot_dimension_numbers<[1], [0], [0], [1], [0, 0, 1, 1], [], []>} : vector<16x128xbf16>, vector<128x128xbf16>, vector<16x128xf32> -> vector<16x128xf32>
    %c0_3 = arith.constant 0 : index
    %c0_4 = arith.constant 0 : index
    %3 = vector.load %arg2[%c0_3, %c0_4] : memref<16x128xbf16, #tpu.memory_space<vmem>>, vector<16x128xbf16>
    %c0_5 = arith.constant 0 : index
    %c0_6 = arith.constant 0 : index
    %4 = vector.load %arg4[%c0_5, %c0_6] : memref<128x128xbf16, #tpu.memory_space<vmem>>, vector<128x128xbf16>
    %cst_7 = arith.constant dense<0.000000e+00> : vector<16x128xf32>
    %5 = tpu.matmul %3, %4, %cst_7 {dimension_numbers = #tpu.dot_dimension_numbers<[1], [0], [0], [1], [0, 0, 1, 1], [], []>} : vector<16x128xbf16>, vector<128x128xbf16>, vector<16x128xf32> -> vector<16x128xf32>
    %6 = arith.addf %2, %5 : vector<16x128xf32>
    %c0_8 = arith.constant 0 : index
    %c0_9 = arith.constant 0 : index
    %7 = vector.load %arg5[%c0_8, %c0_9] : memref<1x128xf32, #tpu.memory_space<vmem>>, vector<1x128xf32>
    %8 = vector.broadcast %7 : vector<1x128xf32> to vector<16x128xf32>
    %9 = arith.addf %6, %8 : vector<16x128xf32>
    %cst_10 = arith.constant 0.000000e+00 : f32
    %10 = vector.broadcast %cst_10 : f32 to vector<16x128xf32>
    %11 = arith.maximumf %9, %10 : vector<16x128xf32>
    %12 = arith.truncf %11 : vector<16x128xf32> to vector<16x128xbf16>
    %c0_11 = arith.constant 0 : index
    %c0_12 = arith.constant 0 : index
    %13 = vector.load %arg6[%c0_11, %c0_12] : memref<128x128xbf16, #tpu.memory_space<vmem>>, vector<128x128xbf16>
    %cst_13 = arith.constant dense<0.000000e+00> : vector<16x128xf32>
    %14 = tpu.matmul %12, %13, %cst_13 {dimension_numbers = #tpu.dot_dimension_numbers<[1], [0], [0], [1], [0, 0, 1, 1], [], []>} : vector<16x128xbf16>, vector<128x128xbf16>, vector<16x128xf32> -> vector<16x128xf32>
    %c0_14 = arith.constant 0 : index
    %c0_15 = arith.constant 0 : index
    %15 = vector.load %arg7[%c0_14, %c0_15] : memref<16x128xf32, #tpu.memory_space<vmem>>, vector<16x128xf32>
    tpu.vector_store %arg7[%c0_14, %c0_15], %14 {strides = array<i32>} : memref<16x128xf32, #tpu.memory_space<vmem>>, vector<16x128xf32>,
    return
  }
  func.func @transform_0(%arg0: i32) -> (i32, i32) {
    %c0_i32 = arith.constant 0 : i32
    %c0_i32_0 = arith.constant 0 : i32
    return %arg0, %c0_i32 : i32, i32
  }
  func.func @transform_1(%arg0: i32) -> (i32, i32) {
    %c0_i32 = arith.constant 0 : i32
    %c0_i32_0 = arith.constant 0 : i32
    return %arg0, %c0_i32 : i32, i32
  }
  func.func @transform_2(%arg0: i32) -> (i32, i32) {
    %c0_i32 = arith.constant 0 : i32
    %c0_i32_0 = arith.constant 0 : i32
    %c0_i32_1 = arith.constant 0 : i32
    return %c0_i32, %c0_i32_0 : i32, i32
  }
  func.func @transform_3(%arg0: i32) -> (i32, i32) {
    %c0_i32 = arith.constant 0 : i32
    %c0_i32_0 = arith.constant 0 : i32
    %c0_i32_1 = arith.constant 0 : i32
    return %c0_i32, %c0_i32_0 : i32, i32
  }
  func.func @transform_4(%arg0: i32) -> (i32, i32) {
    %c0_i32 = arith.constant 0 : i32
    %c0_i32_0 = arith.constant 0 : i32
    %c0_i32_1 = arith.constant 0 : i32
    return %c0_i32, %c0_i32_0 : i32, i32
  }
  func.func @transform_5(%arg0: i32) -> (i32, i32) {
    %c0_i32 = arith.constant 0 : i32
    %c0_i32_0 = arith.constant 0 : i32
    %c0_i32_1 = arith.constant 0 : i32
    return %c0_i32, %c0_i32_0 : i32, i32
  }
  func.func @transform_6(%arg0: i32) -> (i32, i32) {
    %c0_i32 = arith.constant 0 : i32
    %c0_i32_0 = arith.constant 0 : i32
    return %arg0, %c0_i32 : i32, i32
  }
}

</mosaic_0001>

<llo_original>
// kernel: tpu_custom_call.1
$region0: #{tpu_custom_call.1}
  #allocation0 [shape = 'u32[]', space=smem, size = 0x4, offset = 0x4, fixed_abs, tag = 'smem constant byte address 0x4 - core index']
  #allocation1 [shape = 'u32[144,128]{1,0:T(1,128)}', space=vmem, size = 0x12000, scoped, tag = 'internal scratch']
  %s0 = inlined_call_operand.hbm [shape: bf16[16,128], index: 0, kind: input, shape index: {}]
  %s1 = inlined_call_operand.hbm [shape: bf16[16,128], index: 1, kind: input, shape index: {}]
  %s2 = inlined_call_operand.hbm [shape: bf16[128,128], index: 2, kind: input, shape index: {}]
  %s3 = inlined_call_operand.hbm [shape: bf16[128,128], index: 3, kind: input, shape index: {}]
  %s4 = inlined_call_operand.vmem [shape: f32[1,128], index: 4, kind: input, shape index: {}]
  %s5 = inlined_call_operand.hbm [shape: bf16[128,128], index: 5, kind: input, shape index: {}]
  %s6 = inlined_call_operand.hbm [shape: f32[16,128], index: 6, kind: output, shape index: {}]
  %s7 = sld [smem:[#allocation0]]
  $region54: #{tpu_custom_call.1} parent=0
    _
  %s9 = ssub.s32 1, %s7
  %s10 = scalar_select 0, %s9, %s7
  $region1: #{tpu_custom_call.1} parent=0
    #allocation2 [shape = 'u8[4096]{0}', space=vmem, size = 0x1000, scoped, tag = 'input window, operand 0, single buffered']
    #allocation3 [shape = 's32[1]{0}', space=sflag, size = 0x4, scoped, tag = 'scoped memory for tpu_custom_call.1']
    #allocation4 [shape = 's32[1]{0}', space=sflag, size = 0x4, scoped, tag = 'scoped memory for tpu_custom_call.1']
    #allocation5 [shape = 'u8[4096]{0}', space=vmem, size = 0x1000, scoped, tag = 'input window, operand 1, single buffered']
    #allocation6 [shape = 's32[1]{0}', space=sflag, size = 0x4, scoped, tag = 'scoped memory for tpu_custom_call.1']
    #allocation7 [shape = 'u8[32768]{0}', space=vmem, size = 0x8000, scoped, tag = 'input window, operand 2, single buffered']
    #allocation8 [shape = 'u8[32768]{0}', space=vmem, size = 0x8000, scoped, tag = 'input window, operand 3, single buffered']
    #allocation9 [shape = 's32[1]{0}', space=sflag, size = 0x4, scoped, tag = 'scoped memory for tpu_custom_call.1']
    #allocation10 [shape = 'u8[32768]{0}', space=vmem, size = 0x8000, scoped, tag = 'input window, operand 5, single buffered']
    #allocation11 [shape = 'u8[8192]{0}', space=vmem, size = 0x2000, scoped, tag = 'output window, operand 0, single buffered']
    %11 = vsyncpa [#allocation3], 0
    %12 = vsyncpa [#allocation6], 0
    %13 = vsyncpa [#allocation9], 0
    %14 = vsyncpa [#allocation4], 0
    // Predicated region
    $region2: #{tpu_custom_call.1} parent=1 // pred_check
      _
    $region3: #{tpu_custom_call.1} parent=1 // pred_check_branch
      %16 = sbr.rel (0) target = $region5
    $region4: #{tpu_custom_call.1} parent=1 // pred_region
      %s18 = ssub.s32 128, 128
      %19 = vsyncadd [#allocation3], %s18
      %s20 = sshll.u32 [#allocation2], 4
      %s21 = int_to_ptr.vmem [resolvable:$true] %s20
      %26 = dma.hbm_to_vmem [thread:$0]  %s0, 128, %s21, [#allocation3], 64, 64, 4
    $region5: #{tpu_custom_call.1} parent=1 // pred_fallthru
      _
    // Predicated region
    $region6: #{tpu_custom_call.1} parent=1 // pred_check
      _
    $region7: #{tpu_custom_call.1} parent=1 // pred_check_branch
      %28 = sbr.rel (0) target = $region9
    $region8: #{tpu_custom_call.1} parent=1 // pred_region
      %s30 = ssub.s32 128, 128
      %31 = vsyncadd [#allocation6], %s30
      %s32 = sshll.u32 [#allocation5], 4
      %s33 = int_to_ptr.vmem [resolvable:$true] %s32
      %38 = dma.hbm_to_vmem [thread:$0]  %s1, 128, %s33, [#allocation6], 64, 64, 4
    $region9: #{tpu_custom_call.1} parent=1 // pred_fallthru
      _
    // Predicated region
    $region10: #{tpu_custom_call.1} parent=1 // pred_check
      _
    $region11: #{tpu_custom_call.1} parent=1 // pred_check_branch
      %40 = sbr.rel (0) target = $region13
    $region12: #{tpu_custom_call.1} parent=1 // pred_region
      %s42 = ssub.s32 1024, 1024
      %43 = vsyncadd [#allocation6], %s42
      %s44 = sshll.u32 [#allocation7], 4
      %s45 = int_to_ptr.vmem [resolvable:$true] %s44
      %50 = dma.hbm_to_vmem [thread:$0]  %s2, 1024, %s45, [#allocation6], 64, 64, 4
    $region13: #{tpu_custom_call.1} parent=1 // pred_fallthru
      _
    // Predicated region
    $region14: #{tpu_custom_call.1} parent=1 // pred_check
      _
    $region15: #{tpu_custom_call.1} parent=1 // pred_check_branch
      %52 = sbr.rel (0) target = $region17
    $region16: #{tpu_custom_call.1} parent=1 // pred_region
      %s54 = ssub.s32 1024, 1024
      %55 = vsyncadd [#allocation9], %s54
      %s56 = sshll.u32 [#allocation8], 4
      %s57 = int_to_ptr.vmem [resolvable:$true] %s56
      %62 = dma.hbm_to_vmem [thread:$0]  %s3, 1024, %s57, [#allocation9], 64, 64, 4
    $region17: #{tpu_custom_call.1} parent=1 // pred_fallthru
      _
    // Predicated region
    $region18: #{tpu_custom_call.1} parent=1 // pred_check
      _
    $region19: #{tpu_custom_call.1} parent=1 // pred_check_branch
      %64 = sbr.rel (0) target = $region21
    $region20: #{tpu_custom_call.1} parent=1 // pred_region
      _
    $region21: #{tpu_custom_call.1} parent=1 // pred_fallthru
      _
    // Predicated region
    $region22: #{tpu_custom_call.1} parent=1 // pred_check
      _
    $region23: #{tpu_custom_call.1} parent=1 // pred_check_branch
      %66 = sbr.rel (0) target = $region25
    $region24: #{tpu_custom_call.1} parent=1 // pred_region
      %s68 = ssub.s32 1024, 1024
      %69 = vsyncadd [#allocation9], %s68
      %s70 = sshll.u32 [#allocation10], 4
      %s71 = int_to_ptr.vmem [resolvable:$true] %s70
      %76 = dma.hbm_to_vmem [thread:$0]  %s5, 1024, %s71, [#allocation9], 64, 64, 4
    $region25: #{tpu_custom_call.1} parent=1 // pred_fallthru
      _
    // Predicated region
    $region26: #{tpu_custom_call.1} parent=1 // pred_check
      _
    $region27: #{tpu_custom_call.1} parent=1 // pred_check_branch
      %78 = sbr.rel (0) target = $region29
    $region28: #{tpu_custom_call.1} parent=1 // pred_region
      %79 = dma.done [#allocation3], 128
    $region29: #{tpu_custom_call.1} parent=1 // pred_fallthru
      _
    // Predicated region
    $region30: #{tpu_custom_call.1} parent=1 // pred_check
      _
    $region31: #{tpu_custom_call.1} parent=1 // pred_check_branch
      %81 = sbr.rel (0) target = $region33
    $region32: #{tpu_custom_call.1} parent=1 // pred_region
      %82 = dma.done [#allocation6], 128
    $region33: #{tpu_custom_call.1} parent=1 // pred_fallthru
      _
    // Predicated region
    $region34: #{tpu_custom_call.1} parent=1 // pred_check
      _
    $region35: #{tpu_custom_call.1} parent=1 // pred_check_branch
      %84 = sbr.rel (0) target = $region37
    $region36: #{tpu_custom_call.1} parent=1 // pred_region
      %85 = dma.done [#allocation6], 1024
    $region37: #{tpu_custom_call.1} parent=1 // pred_fallthru
      _
    // Predicated region
    $region38: #{tpu_custom_call.1} parent=1 // pred_check
      _
    $region39: #{tpu_custom_call.1} parent=1 // pred_check_branch
      %87 = sbr.rel (0) target = $region41
    $region40: #{tpu_custom_call.1} parent=1 // pred_region
      %88 = dma.done [#allocation9], 1024
    $region41: #{tpu_custom_call.1} parent=1 // pred_fallthru
      _
    // Predicated region
    $region42: #{tpu_custom_call.1} parent=1 // pred_check
      _
    $region43: #{tpu_custom_call.1} parent=1 // pred_check_branch
      %90 = sbr.rel (0) target = $region45
    $region44: #{tpu_custom_call.1} parent=1 // pred_region
      %91 = dma.done [#allocation9], 1024
    $region45: #{tpu_custom_call.1} parent=1 // pred_fallthru
      _
    %v93 = vld [vmem:[#allocation2] sm:$0xf]
    %v94 = vld [vmem:[#allocation2 + $0x4] sm:$0xf]
    %v95 = vld [vmem:[#allocation7] sm:$0xf]
    %v96 = vld [vmem:[#allocation7 + $0x4] sm:$0xf]
    %v97 = vld [vmem:[#allocation7 + $0x8] sm:$0xf]
    %v98 = vld [vmem:[#allocation7 + $0xc] sm:$0xf]
    %v99 = vld [vmem:[#allocation7 + $0x10] sm:$0xf]
    %v100 = vld [vmem:[#allocation7 + $0x14] sm:$0xf]
    %v101 = vld [vmem:[#allocation7 + $0x18] sm:$0xf]
    %v102 = vld [vmem:[#allocation7 + $0x1c] sm:$0xf]
    %v103 = vld [vmem:[#allocation7 + $0x20] sm:$0xf]
    %v104 = vld [vmem:[#allocation7 + $0x24] sm:$0xf]
    %v105 = vld [vmem:[#allocation7 + $0x28] sm:$0xf]
    %v106 = vld [vmem:[#allocation7 + $0x2c] sm:$0xf]
    %v107 = vld [vmem:[#allocation7 + $0x30] sm:$0xf]
    %v108 = vld [vmem:[#allocation7 + $0x34] sm:$0xf]
    %v109 = vld [vmem:[#allocation7 + $0x38] sm:$0xf]
    %v110 = vld [vmem:[#allocation7 + $0x3c] sm:$0xf]
    %v111 = vld [vmem:[#allocation5] sm:$0xf]
    %v112 = vld [vmem:[#allocation5 + $0x4] sm:$0xf]
    %v113 = vld [vmem:[#allocation8] sm:$0xf]
    %v114 = vld [vmem:[#allocation8 + $0x4] sm:$0xf]
    %v115 = vld [vmem:[#allocation8 + $0x8] sm:$0xf]
    %v116 = vld [vmem:[#allocation8 + $0xc] sm:$0xf]
    %v117 = vld [vmem:[#allocation8 + $0x10] sm:$0xf]
    %v118 = vld [vmem:[#allocation8 + $0x14] sm:$0xf]
    %v119 = vld [vmem:[#allocation8 + $0x18] sm:$0xf]
    %v120 = vld [vmem:[#allocation8 + $0x1c] sm:$0xf]
    %v121 = vld [vmem:[#allocation8 + $0x20] sm:$0xf]
    %v122 = vld [vmem:[#allocation8 + $0x24] sm:$0xf]
    %v123 = vld [vmem:[#allocation8 + $0x28] sm:$0xf]
    %v124 = vld [vmem:[#allocation8 + $0x2c] sm:$0xf]
    %v125 = vld [vmem:[#allocation8 + $0x30] sm:$0xf]
    %v126 = vld [vmem:[#allocation8 + $0x34] sm:$0xf]
    %v127 = vld [vmem:[#allocation8 + $0x38] sm:$0xf]
    %v128 = vld [vmem:[#allocation8 + $0x3c] sm:$0xf]
    %v131 = vunpack.c.l.b16 %v111
    %v132 = vunpack.c.l.b16 %v112
    %v133 = vpack.c.b16 %v132, %v131
    %v151 = vunpack.c.l.b16 %v113
    %v152 = vunpack.c.l.b16 %v114
    %v153 = vunpack.c.l.b16 %v115
    %v154 = vunpack.c.l.b16 %v116
    %v155 = vunpack.c.l.b16 %v117
    %v156 = vunpack.c.l.b16 %v118
    %v157 = vunpack.c.l.b16 %v119
    %v158 = vunpack.c.l.b16 %v120
    %v159 = vunpack.c.l.b16 %v121
    %v160 = vunpack.c.l.b16 %v122
    %v161 = vunpack.c.l.b16 %v123
    %v162 = vunpack.c.l.b16 %v124
    %v163 = vunpack.c.l.b16 %v125
    %v164 = vunpack.c.l.b16 %v126
    %v165 = vunpack.c.l.b16 %v127
    %v166 = vunpack.c.l.b16 %v128
    %v167 = vpack.c.b16 %v152, %v151
    %v168 = vpack.c.b16 %v154, %v153
    %v169 = vpack.c.b16 %v156, %v155
    %v170 = vpack.c.b16 %v158, %v157
    %v171 = vpack.c.b16 %v160, %v159
    %v172 = vpack.c.b16 %v162, %v161
    %v173 = vpack.c.b16 %v164, %v163
    %v174 = vpack.c.b16 %v166, %v165
    %183 = vmatprep.subr.bf16.mxu0 0
    %184 = vmatpush1.bf16.msra.mxu0 %v167
    %185 = vmatprep.subr.bf16.mxu0 0
    %186 = vmatpush1.bf16.msra.mxu0 %v168
    %187 = vmatprep.subr.bf16.mxu0 0
    %188 = vmatpush1.bf16.msra.mxu0 %v169
    %189 = vmatprep.subr.bf16.mxu0 0
    %190 = vmatpush1.bf16.msra.mxu0 %v170
    %191 = vmatprep.subr.bf16.mxu0 0
    %192 = vmatpush1.bf16.msra.mxu0 %v171
    %193 = vmatprep.subr.bf16.mxu0 0
    %194 = vmatpush1.bf16.msra.mxu0 %v172
    %195 = vmatprep.subr.bf16.mxu0 0
    %196 = vmatpush1.bf16.msra.mxu0 %v173
    %197 = vmatprep.subr.bf16.mxu0 0
    %198 = vmatpush1.bf16.msra.mxu0 %v174
    %199 = vmatprep.subr.bf16.mxu0 0
    %200 = vmatpush1.bf16.msra.mxu0 0
    %201 = vmatprep.subr.bf16.mxu0 0
    %202 = vmatpush1.bf16.msra.mxu0 0
    %203 = vmatprep.subr.bf16.mxu0 0
    %204 = vmatpush1.bf16.msra.mxu0 0
    %205 = vmatprep.subr.bf16.mxu0 0
    %206 = vmatpush1.bf16.msra.mxu0 0
    %207 = vmatprep.subr.bf16.mxu0 0
    %208 = vmatpush1.bf16.msra.mxu0 0
    %209 = vmatprep.subr.bf16.mxu0 0
    %210 = vmatpush1.bf16.msra.mxu0 0
    %211 = vmatprep.subr.bf16.mxu0 0
    %212 = vmatpush1.bf16.msra.mxu0 0
    %213 = vmatprep.subr.bf16.mxu0 0
    %214 = vmatpush1.bf16.msra.mxu0 0
    %215 = vmatprep.mubr.bf16.mxu0 0
    %216 = vmatmul.mubr.bf16.gmra.mrb[0].mxu0 %v133
    %v217 = vpop.f32.mrb[0].mxu0
    %v218 = vadd.f32 0.0, %v217
    %v219 = vpop.f32.mrb[0].mxu0
    %v220 = vpop.f32.mrb[0].mxu0
    %v221 = vadd.f32 0.0, %v220
    %v222 = vpop.f32.mrb[0].mxu0
    %223 = vdwg.mxu0
    %v226 = vunpack.c.l.b16 %v93
    %v227 = vunpack.c.l.b16 %v94
    %v228 = vpack.c.b16 %v227, %v226
    %v246 = vunpack.c.l.b16 %v95
    %v247 = vunpack.c.l.b16 %v96
    %v248 = vunpack.c.l.b16 %v97
    %v249 = vunpack.c.l.b16 %v98
    %v250 = vunpack.c.l.b16 %v99
    %v251 = vunpack.c.l.b16 %v100
    %v252 = vunpack.c.l.b16 %v101
    %v253 = vunpack.c.l.b16 %v102
    %v254 = vunpack.c.l.b16 %v103
    %v255 = vunpack.c.l.b16 %v104
    %v256 = vunpack.c.l.b16 %v105
    %v257 = vunpack.c.l.b16 %v106
    %v258 = vunpack.c.l.b16 %v107
    %v259 = vunpack.c.l.b16 %v108
    %v260 = vunpack.c.l.b16 %v109
    %v261 = vunpack.c.l.b16 %v110
    %v262 = vpack.c.b16 %v247, %v246
    %v263 = vpack.c.b16 %v249, %v248
    %v264 = vpack.c.b16 %v251, %v250
    %v265 = vpack.c.b16 %v253, %v252
    %v266 = vpack.c.b16 %v255, %v254
    %v267 = vpack.c.b16 %v257, %v256
    %v268 = vpack.c.b16 %v259, %v258
    %v269 = vpack.c.b16 %v261, %v260
    %278 = vmatprep.subr.bf16.mxu0 0
    %279 = vmatpush1.bf16.msra.mxu0 %v262
    %280 = vmatprep.subr.bf16.mxu0 0
    %281 = vmatpush1.bf16.msra.mxu0 %v263
    %282 = vmatprep.subr.bf16.mxu0 0
    %283 = vmatpush1.bf16.msra.mxu0 %v264
    %284 = vmatprep.subr.bf16.mxu0 0
    %285 = vmatpush1.bf16.msra.mxu0 %v265
    %286 = vmatprep.subr.bf16.mxu0 0
    %287 = vmatpush1.bf16.msra.mxu0 %v266
    %288 = vmatprep.subr.bf16.mxu0 0
    %289 = vmatpush1.bf16.msra.mxu0 %v267
    %290 = vmatprep.subr.bf16.mxu0 0
    %291 = vmatpush1.bf16.msra.mxu0 %v268
    %292 = vmatprep.subr.bf16.mxu0 0
    %293 = vmatpush1.bf16.msra.mxu0 %v269
    %294 = vmatprep.subr.bf16.mxu0 0
    %295 = vmatpush1.bf16.msra.mxu0 0
    %296 = vmatprep.subr.bf16.mxu0 0
    %297 = vmatpush1.bf16.msra.mxu0 0
    %298 = vmatprep.subr.bf16.mxu0 0
    %299 = vmatpush1.bf16.msra.mxu0 0
    %300 = vmatprep.subr.bf16.mxu0 0
    %301 = vmatpush1.bf16.msra.mxu0 0
    %302 = vmatprep.subr.bf16.mxu0 0
    %303 = vmatpush1.bf16.msra.mxu0 0
    %304 = vmatprep.subr.bf16.mxu0 0
    %305 = vmatpush1.bf16.msra.mxu0 0
    %306 = vmatprep.subr.bf16.mxu0 0
    %307 = vmatpush1.bf16.msra.mxu0 0
    %308 = vmatprep.subr.bf16.mxu0 0
    %309 = vmatpush1.bf16.msra.mxu0 0
    %310 = vmatprep.mubr.bf16.mxu0 0
    %311 = vmatmul.mubr.bf16.gmra.mrb[0].mxu0 %v228
    %v312 = vpop.f32.mrb[0].mxu0
    %v313 = vadd.f32 %v218, %v312
    %v314 = vpop.f32.mrb[0].mxu0
    %v315 = vpop.f32.mrb[0].mxu0
    %v316 = vadd.f32 %v221, %v315
    %v317 = vpop.f32.mrb[0].mxu0
    %318 = vdwg.mxu0
    %v319 = vld [vmem:[%s4] sm:$0x1]
    %v321 = vlaneseq
    %v322 = vshrl.u32 %v321, 7
    %v323 = vsub.s32 0, %v322
    %v324 = vrot.slane %v319, %v323
    %v326 = vadd.f32 %v313, %v324
    %v327 = vadd.f32 %v316, %v324
    %v328 = vmax.f32 %v326, 0.0
    %v329 = vmax.f32 %v327, 0.0
    %v330 = vpack.c.bf16 %v329, %v328
    %v331 = vld [vmem:[#allocation10] sm:$0xf]
    %v332 = vld [vmem:[#allocation10 + $0x4] sm:$0xf]
    %v333 = vld [vmem:[#allocation10 + $0x8] sm:$0xf]
    %v334 = vld [vmem:[#allocation10 + $0xc] sm:$0xf]
    %v335 = vld [vmem:[#allocation10 + $0x10] sm:$0xf]
    %v336 = vld [vmem:[#allocation10 + $0x14] sm:$0xf]
    %v337 = vld [vmem:[#allocation10 + $0x18] sm:$0xf]
    %v338 = vld [vmem:[#allocation10 + $0x1c] sm:$0xf]
    %v339 = vld [vmem:[#allocation10 + $0x20] sm:$0xf]
    %v340 = vld [vmem:[#allocation10 + $0x24] sm:$0xf]
    %v341 = vld [vmem:[#allocation10 + $0x28] sm:$0xf]
    %v342 = vld [vmem:[#allocation10 + $0x2c] sm:$0xf]
    %v343 = vld [vmem:[#allocation10 + $0x30] sm:$0xf]
    %v344 = vld [vmem:[#allocation10 + $0x34] sm:$0xf]
    %v345 = vld [vmem:[#allocation10 + $0x38] sm:$0xf]
    %v346 = vld [vmem:[#allocation10 + $0x3c] sm:$0xf]
    %v363 = vunpack.c.l.b16 %v331
    %v364 = vunpack.c.l.b16 %v332
    %v365 = vunpack.c.l.b16 %v333
    %v366 = vunpack.c.l.b16 %v334
    %v367 = vunpack.c.l.b16 %v335
    %v368 = vunpack.c.l.b16 %v336
    %v369 = vunpack.c.l.b16 %v337
    %v370 = vunpack.c.l.b16 %v338
    %v371 = vunpack.c.l.b16 %v339
    %v372 = vunpack.c.l.b16 %v340
    %v373 = vunpack.c.l.b16 %v341
    %v374 = vunpack.c.l.b16 %v342
    %v375 = vunpack.c.l.b16 %v343
    %v376 = vunpack.c.l.b16 %v344
    %v377 = vunpack.c.l.b16 %v345
    %v378 = vunpack.c.l.b16 %v346
    %v379 = vpack.c.b16 %v364, %v363
    %v380 = vpack.c.b16 %v366, %v365
    %v381 = vpack.c.b16 %v368, %v367
    %v382 = vpack.c.b16 %v370, %v369
    %v383 = vpack.c.b16 %v372, %v371
    %v384 = vpack.c.b16 %v374, %v373
    %v385 = vpack.c.b16 %v376, %v375
    %v386 = vpack.c.b16 %v378, %v377
    %395 = vmatprep.subr.bf16.mxu0 0
    %396 = vmatpush1.bf16.msra.mxu0 %v379
    %397 = vmatprep.subr.bf16.mxu0 0
    %398 = vmatpush1.bf16.msra.mxu0 %v380
    %399 = vmatprep.subr.bf16.mxu0 0
    %400 = vmatpush1.bf16.msra.mxu0 %v381
    %401 = vmatprep.subr.bf16.mxu0 0
    %402 = vmatpush1.bf16.msra.mxu0 %v382
    %403 = vmatprep.subr.bf16.mxu0 0
    %404 = vmatpush1.bf16.msra.mxu0 %v383
    %405 = vmatprep.subr.bf16.mxu0 0
    %406 = vmatpush1.bf16.msra.mxu0 %v384
    %407 = vmatprep.subr.bf16.mxu0 0
    %408 = vmatpush1.bf16.msra.mxu0 %v385
    %409 = vmatprep.subr.bf16.mxu0 0
    %410 = vmatpush1.bf16.msra.mxu0 %v386
    %411 = vmatprep.subr.bf16.mxu0 0
    %412 = vmatpush1.bf16.msra.mxu0 0
    %413 = vmatprep.subr.bf16.mxu0 0
    %414 = vmatpush1.bf16.msra.mxu0 0
    %415 = vmatprep.subr.bf16.mxu0 0
    %416 = vmatpush1.bf16.msra.mxu0 0
    %417 = vmatprep.subr.bf16.mxu0 0
    %418 = vmatpush1.bf16.msra.mxu0 0
    %419 = vmatprep.subr.bf16.mxu0 0
    %420 = vmatpush1.bf16.msra.mxu0 0
    %421 = vmatprep.subr.bf16.mxu0 0
    %422 = vmatpush1.bf16.msra.mxu0 0
    %423 = vmatprep.subr.bf16.mxu0 0
    %424 = vmatpush1.bf16.msra.mxu0 0
    %425 = vmatprep.subr.bf16.mxu0 0
    %426 = vmatpush1.bf16.msra.mxu0 0
    %427 = vmatprep.mubr.bf16.mxu0 0
    %428 = vmatmul.mubr.bf16.gmra.mrb[0].mxu0 %v330
    %v429 = vpop.f32.mrb[0].mxu0
    %v430 = vadd.f32 0.0, %v429
    %v431 = vpop.f32.mrb[0].mxu0
    %v432 = vpop.f32.mrb[0].mxu0
    %v433 = vadd.f32 0.0, %v432
    %v434 = vpop.f32.mrb[0].mxu0
    %435 = vdwg.mxu0
    %436 = vst [vmem:[#allocation11] sm:$0xff] %v430
    %437 = vst [vmem:[#allocation11 + $0x8] sm:$0xff] %v433
    // Predicated region
    $region46: #{tpu_custom_call.1} parent=1 // pred_check
      _
    $region47: #{tpu_custom_call.1} parent=1 // pred_check_branch
      %439 = sbr.rel (0) target = $region49
    $region48: #{tpu_custom_call.1} parent=1 // pred_region
      %s441 = ssub.s32 256, 256
      %442 = vsyncadd [#allocation4], %s441
      %s443 = sshll.u32 [#allocation11], 4
      %s444 = int_to_ptr.vmem [resolvable:$true] %s443
      %449 = dma.vmem_to_hbm [thread:$0]  %s444, 256, %s6, [#allocation4], 128, 128, 8
    $region49: #{tpu_custom_call.1} parent=1 // pred_fallthru
      _
    // Predicated region
    $region50: #{tpu_custom_call.1} parent=1 // pred_check
      _
    $region51: #{tpu_custom_call.1} parent=1 // pred_check_branch
      %451 = sbr.rel (0) target = $region53
    $region52: #{tpu_custom_call.1} parent=1 // pred_region
      %452 = dma.done [#allocation4], 256
    $region53: #{tpu_custom_call.1} parent=1 // pred_fallthru
      _
    %453 = vsyncpa [#allocation3], 1
    %454 = vsyncpa [#allocation6], 1
    %455 = vsyncpa [#allocation9], 1
    %456 = vsyncpa [#allocation4], 1

// kernel: tpu_custom_call.1
$region0: #{tpu_custom_call.1}
  #allocation0 [shape = 'u32[]', space=smem, size = 0x4, offset = 0x4, fixed_abs, tag = 'smem constant byte address 0x4 - core index']
  #allocation1 [shape = 'u32[144,128]{1,0:T(1,128)}', space=vmem, size = 0x12000, scoped, tag = 'internal scratch']
  %s0 = inlined_call_operand.hbm [shape: bf16[16,128], index: 0, kind: input, shape index: {}]
  %s1 = inlined_call_operand.hbm [shape: bf16[16,128], index: 1, kind: input, shape index: {}]
  %s2 = inlined_call_operand.hbm [shape: bf16[128,128], index: 2, kind: input, shape index: {}]
  %s3 = inlined_call_operand.hbm [shape: bf16[128,128], index: 3, kind: input, shape index: {}]
  %s4 = inlined_call_operand.vmem [shape: f32[1,128], index: 4, kind: input, shape index: {}]
  %s5 = inlined_call_operand.hbm [shape: bf16[128,128], index: 5, kind: input, shape index: {}]
  %s6 = inlined_call_operand.hbm [shape: f32[16,128], index: 6, kind: output, shape index: {}]
  %s7 = sld [smem:[#allocation0]]
  $region54: #{tpu_custom_call.1} parent=0
    _
  %s9 = ssub.s32 1, %s7
  %s10 = scalar_select 0, %s9, %s7
  $region1: #{tpu_custom_call.1} parent=0
    #allocation2 [shape = 'u8[4096]{0}', space=vmem, size = 0x1000, scoped, tag = 'input window, operand 0, single buffered']
    #allocation3 [shape = 's32[1]{0}', space=sflag, size = 0x4, scoped, tag = 'scoped memory for tpu_custom_call.1']
    #allocation4 [shape = 's32[1]{0}', space=sflag, size = 0x4, scoped, tag = 'scoped memory for tpu_custom_call.1']
    #allocation5 [shape = 'u8[4096]{0}', space=vmem, size = 0x1000, scoped, tag = 'input window, operand 1, single buffered']
    #allocation6 [shape = 's32[1]{0}', space=sflag, size = 0x4, scoped, tag = 'scoped memory for tpu_custom_call.1']
    #allocation7 [shape = 'u8[32768]{0}', space=vmem, size = 0x8000, scoped, tag = 'input window, operand 2, single buffered']
    #allocation8 [shape = 'u8[32768]{0}', space=vmem, size = 0x8000, scoped, tag = 'input window, operand 3, single buffered']
    #allocation9 [shape = 's32[1]{0}', space=sflag, size = 0x4, scoped, tag = 'scoped memory for tpu_custom_call.1']
    #allocation10 [shape = 'u8[32768]{0}', space=vmem, size = 0x8000, scoped, tag = 'input window, operand 5, single buffered']
    #allocation11 [shape = 'u8[8192]{0}', space=vmem, size = 0x2000, scoped, tag = 'output window, operand 0, single buffered']
    %11 = vsyncpa [#allocation3], 0
    %12 = vsyncpa [#allocation6], 0
    %13 = vsyncpa [#allocation9], 0
    %14 = vsyncpa [#allocation4], 0
    // Predicated region
    $region2: #{tpu_custom_call.1} parent=1 // pred_check
      _
    $region3: #{tpu_custom_call.1} parent=1 // pred_check_branch
      %16 = sbr.rel (0) target = $region5
    $region4: #{tpu_custom_call.1} parent=1 // pred_region
      %s18 = ssub.s32 128, 128
      %19 = vsyncadd [#allocation3], %s18
      %s20 = sshll.u32 [#allocation2], 4
      %s21 = int_to_ptr.vmem [resolvable:$true] %s20
      %26 = dma.hbm_to_vmem [thread:$0]  %s0, 128, %s21, [#allocation3], 64, 64, 4
    $region5: #{tpu_custom_call.1} parent=1 // pred_fallthru
      _
    // Predicated region
    $region6: #{tpu_custom_call.1} parent=1 // pred_check
      _
    $region7: #{tpu_custom_call.1} parent=1 // pred_check_branch
      %28 = sbr.rel (0) target = $region9
    $region8: #{tpu_custom_call.1} parent=1 // pred_region
      %s30 = ssub.s32 128, 128
      %31 = vsyncadd [#allocation6], %s30
      %s32 = sshll.u32 [#allocation5], 4
      %s33 = int_to_ptr.vmem [resolvable:$true] %s32
      %38 = dma.hbm_to_vmem [thread:$0]  %s1, 128, %s33, [#allocation6], 64, 64, 4
    $region9: #{tpu_custom_call.1} parent=1 // pred_fallthru
      _
    // Predicated region
    $region10: #{tpu_custom_call.1} parent=1 // pred_check
      _
    $region11: #{tpu_custom_call.1} parent=1 // pred_check_branch
      %40 = sbr.rel (0) target = $region13
    $region12: #{tpu_custom_call.1} parent=1 // pred_region
      %s42 = ssub.s32 1024, 1024
      %43 = vsyncadd [#allocation6], %s42
      %s44 = sshll.u32 [#allocation7], 4
      %s45 = int_to_ptr.vmem [resolvable:$true] %s44
      %50 = dma.hbm_to_vmem [thread:$0]  %s2, 1024, %s45, [#allocation6], 64, 64, 4
    $region13: #{tpu_custom_call.1} parent=1 // pred_fallthru
      _
    // Predicated region
    $region14: #{tpu_custom_call.1} parent=1 // pred_check
      _
    $region15: #{tpu_custom_call.1} parent=1 // pred_check_branch
      %52 = sbr.rel (0) target = $region17
    $region16: #{tpu_custom_call.1} parent=1 // pred_region
      %s54 = ssub.s32 1024, 1024
      %55 = vsyncadd [#allocation9], %s54
      %s56 = sshll.u32 [#allocation8], 4
      %s57 = int_to_ptr.vmem [resolvable:$true] %s56
      %62 = dma.hbm_to_vmem [thread:$0]  %s3, 1024, %s57, [#allocation9], 64, 64, 4
    $region17: #{tpu_custom_call.1} parent=1 // pred_fallthru
      _
    // Predicated region
    $region18: #{tpu_custom_call.1} parent=1 // pred_check
      _
    $region19: #{tpu_custom_call.1} parent=1 // pred_check_branch
      %64 = sbr.rel (0) target = $region21
    $region20: #{tpu_custom_call.1} parent=1 // pred_region
      _
    $region21: #{tpu_custom_call.1} parent=1 // pred_fallthru
      _
    // Predicated region
    $region22: #{tpu_custom_call.1} parent=1 // pred_check
      _
    $region23: #{tpu_custom_call.1} parent=1 // pred_check_branch
      %66 = sbr.rel (0) target = $region25
    $region24: #{tpu_custom_call.1} parent=1 // pred_region
      %s68 = ssub.s32 1024, 1024
      %69 = vsyncadd [#allocation9], %s68
      %s70 = sshll.u32 [#allocation10], 4
      %s71 = int_to_ptr.vmem [resolvable:$true] %s70
      %76 = dma.hbm_to_vmem [thread:$0]  %s5, 1024, %s71, [#allocation9], 64, 64, 4
    $region25: #{tpu_custom_call.1} parent=1 // pred_fallthru
      _
    // Predicated region
    $region26: #{tpu_custom_call.1} parent=1 // pred_check
      _
    $region27: #{tpu_custom_call.1} parent=1 // pred_check_branch
      %78 = sbr.rel (0) target = $region29
    $region28: #{tpu_custom_call.1} parent=1 // pred_region
      %79 = dma.done [#allocation3], 128
    $region29: #{tpu_custom_call.1} parent=1 // pred_fallthru
      _
    // Predicated region
    $region30: #{tpu_custom_call.1} parent=1 // pred_check
      _
    $region31: #{tpu_custom_call.1} parent=1 // pred_check_branch
      %81 = sbr.rel (0) target = $region33
    $region32: #{tpu_custom_call.1} parent=1 // pred_region
      %82 = dma.done [#allocation6], 128
    $region33: #{tpu_custom_call.1} parent=1 // pred_fallthru
      _
    // Predicated region
    $region34: #{tpu_custom_call.1} parent=1 // pred_check
      _
    $region35: #{tpu_custom_call.1} parent=1 // pred_check_branch
      %84 = sbr.rel (0) target = $region37
    $region36: #{tpu_custom_call.1} parent=1 // pred_region
      %85 = dma.done [#allocation6], 1024
    $region37: #{tpu_custom_call.1} parent=1 // pred_fallthru
      _
    // Predicated region
    $region38: #{tpu_custom_call.1} parent=1 // pred_check
      _
    $region39: #{tpu_custom_call.1} parent=1 // pred_check_branch
      %87 = sbr.rel (0) target = $region41
    $region40: #{tpu_custom_call.1} parent=1 // pred_region
      %88 = dma.done [#allocation9], 1024
    $region41: #{tpu_custom_call.1} parent=1 // pred_fallthru
      _
    // Predicated region
    $region42: #{tpu_custom_call.1} parent=1 // pred_check
      _
    $region43: #{tpu_custom_call.1} parent=1 // pred_check_branch
      %90 = sbr.rel (0) target = $region45
    $region44: #{tpu_custom_call.1} parent=1 // pred_region
      %91 = dma.done [#allocation9], 1024
    $region45: #{tpu_custom_call.1} parent=1 // pred_fallthru
      _
    %v93 = vld [vmem:[#allocation2] sm:$0xf]
    %v94 = vld [vmem:[#allocation2 + $0x4] sm:$0xf]
    %v95 = vld [vmem:[#allocation7] sm:$0xf]
    %v96 = vld [vmem:[#allocation7 + $0x4] sm:$0xf]
    %v97 = vld [vmem:[#allocation7 + $0x8] sm:$0xf]
    %v98 = vld [vmem:[#allocation7 + $0xc] sm:$0xf]
    %v99 = vld [vmem:[#allocation7 + $0x10] sm:$0xf]
    %v100 = vld [vmem:[#allocation7 + $0x14] sm:$0xf]
    %v101 = vld [vmem:[#allocation7 + $0x18] sm:$0xf]
    %v102 = vld [vmem:[#allocation7 + $0x1c] sm:$0xf]
    %v103 = vld [vmem:[#allocation7 + $0x20] sm:$0xf]
    %v104 = vld [vmem:[#allocation7 + $0x24] sm:$0xf]
    %v105 = vld [vmem:[#allocation7 + $0x28] sm:$0xf]
    %v106 = vld [vmem:[#allocation7 + $0x2c] sm:$0xf]
    %v107 = vld [vmem:[#allocation7 + $0x30] sm:$0xf]
    %v108 = vld [vmem:[#allocation7 + $0x34] sm:$0xf]
    %v109 = vld [vmem:[#allocation7 + $0x38] sm:$0xf]
    %v110 = vld [vmem:[#allocation7 + $0x3c] sm:$0xf]
    %v111 = vld [vmem:[#allocation5] sm:$0xf]
    %v112 = vld [vmem:[#allocation5 + $0x4] sm:$0xf]
    %v113 = vld [vmem:[#allocation8] sm:$0xf]
    %v114 = vld [vmem:[#allocation8 + $0x4] sm:$0xf]
    %v115 = vld [vmem:[#allocation8 + $0x8] sm:$0xf]
    %v116 = vld [vmem:[#allocation8 + $0xc] sm:$0xf]
    %v117 = vld [vmem:[#allocation8 + $0x10] sm:$0xf]
    %v118 = vld [vmem:[#allocation8 + $0x14] sm:$0xf]
    %v119 = vld [vmem:[#allocation8 + $0x18] sm:$0xf]
    %v120 = vld [vmem:[#allocation8 + $0x1c] sm:$0xf]
    %v121 = vld [vmem:[#allocation8 + $0x20] sm:$0xf]
    %v122 = vld [vmem:[#allocation8 + $0x24] sm:$0xf]
    %v123 = vld [vmem:[#allocation8 + $0x28] sm:$0xf]
    %v124 = vld [vmem:[#allocation8 + $0x2c] sm:$0xf]
    %v125 = vld [vmem:[#allocation8 + $0x30] sm:$0xf]
    %v126 = vld [vmem:[#allocation8 + $0x34] sm:$0xf]
    %v127 = vld [vmem:[#allocation8 + $0x38] sm:$0xf]
    %v128 = vld [vmem:[#allocation8 + $0x3c] sm:$0xf]
    %v131 = vunpack.c.l.b16 %v111
    %v132 = vunpack.c.l.b16 %v112
    %v133 = vpack.c.b16 %v132, %v131
    %v151 = vunpack.c.l.b16 %v113
    %v152 = vunpack.c.l.b16 %v114
    %v153 = vunpack.c.l.b16 %v115
    %v154 = vunpack.c.l.b16 %v116
    %v155 = vunpack.c.l.b16 %v117
    %v156 = vunpack.c.l.b16 %v118
    %v157 = vunpack.c.l.b16 %v119
    %v158 = vunpack.c.l.b16 %v120
    %v159 = vunpack.c.l.b16 %v121
    %v160 = vunpack.c.l.b16 %v122
    %v161 = vunpack.c.l.b16 %v123
    %v162 = vunpack.c.l.b16 %v124
    %v163 = vunpack.c.l.b16 %v125
    %v164 = vunpack.c.l.b16 %v126
    %v165 = vunpack.c.l.b16 %v127
    %v166 = vunpack.c.l.b16 %v128
    %v167 = vpack.c.b16 %v152, %v151
    %v168 = vpack.c.b16 %v154, %v153
    %v169 = vpack.c.b16 %v156, %v155
    %v170 = vpack.c.b16 %v158, %v157
    %v171 = vpack.c.b16 %v160, %v159
    %v172 = vpack.c.b16 %v162, %v161
    %v173 = vpack.c.b16 %v164, %v163
    %v174 = vpack.c.b16 %v166, %v165
    %183 = vmatprep.subr.bf16.mxu0 0
    %184 = vmatpush1.bf16.msra.mxu0 %v167
    %185 = vmatprep.subr.bf16.mxu0 0
    %186 = vmatpush1.bf16.msra.mxu0 %v168
    %187 = vmatprep.subr.bf16.mxu0 0
    %188 = vmatpush1.bf16.msra.mxu0 %v169
    %189 = vmatprep.subr.bf16.mxu0 0
    %190 = vmatpush1.bf16.msra.mxu0 %v170
    %191 = vmatprep.subr.bf16.mxu0 0
    %192 = vmatpush1.bf16.msra.mxu0 %v171
    %193 = vmatprep.subr.bf16.mxu0 0
    %194 = vmatpush1.bf16.msra.mxu0 %v172
    %195 = vmatprep.subr.bf16.mxu0 0
    %196 = vmatpush1.bf16.msra.mxu0 %v173
    %197 = vmatprep.subr.bf16.mxu0 0
    %198 = vmatpush1.bf16.msra.mxu0 %v174
    %199 = vmatprep.subr.bf16.mxu0 0
    %200 = vmatpush1.bf16.msra.mxu0 0
    %201 = vmatprep.subr.bf16.mxu0 0
    %202 = vmatpush1.bf16.msra.mxu0 0
    %203 = vmatprep.subr.bf16.mxu0 0
    %204 = vmatpush1.bf16.msra.mxu0 0
    %205 = vmatprep.subr.bf16.mxu0 0
    %206 = vmatpush1.bf16.msra.mxu0 0
    %207 = vmatprep.subr.bf16.mxu0 0
    %208 = vmatpush1.bf16.msra.mxu0 0
    %209 = vmatprep.subr.bf16.mxu0 0
    %210 = vmatpush1.bf16.msra.mxu0 0
    %211 = vmatprep.subr.bf16.mxu0 0
    %212 = vmatpush1.bf16.msra.mxu0 0
    %213 = vmatprep.subr.bf16.mxu0 0
    %214 = vmatpush1.bf16.msra.mxu0 0
    %215 = vmatprep.mubr.bf16.mxu0 0
    %216 = vmatmul.mubr.bf16.gmra.mrb[0].mxu0 %v133
    %v217 = vpop.f32.mrb[0].mxu0
    %v218 = vadd.f32 0.0, %v217
    %v219 = vpop.f32.mrb[0].mxu0
    %v220 = vpop.f32.mrb[0].mxu0
    %v221 = vadd.f32 0.0, %v220
    %v222 = vpop.f32.mrb[0].mxu0
    %223 = vdwg.mxu0
    %v226 = vunpack.c.l.b16 %v93
    %v227 = vunpack.c.l.b16 %v94
    %v228 = vpack.c.b16 %v227, %v226
    %v246 = vunpack.c.l.b16 %v95
    %v247 = vunpack.c.l.b16 %v96
    %v248 = vunpack.c.l.b16 %v97
    %v249 = vunpack.c.l.b16 %v98
    %v250 = vunpack.c.l.b16 %v99
    %v251 = vunpack.c.l.b16 %v100
    %v252 = vunpack.c.l.b16 %v101
    %v253 = vunpack.c.l.b16 %v102
    %v254 = vunpack.c.l.b16 %v103
    %v255 = vunpack.c.l.b16 %v104
    %v256 = vunpack.c.l.b16 %v105
    %v257 = vunpack.c.l.b16 %v106
    %v258 = vunpack.c.l.b16 %v107
    %v259 = vunpack.c.l.b16 %v108
    %v260 = vunpack.c.l.b16 %v109
    %v261 = vunpack.c.l.b16 %v110
    %v262 = vpack.c.b16 %v247, %v246
    %v263 = vpack.c.b16 %v249, %v248
    %v264 = vpack.c.b16 %v251, %v250
    %v265 = vpack.c.b16 %v253, %v252
    %v266 = vpack.c.b16 %v255, %v254
    %v267 = vpack.c.b16 %v257, %v256
    %v268 = vpack.c.b16 %v259, %v258
    %v269 = vpack.c.b16 %v261, %v260
    %278 = vmatprep.subr.bf16.mxu0 0
    %279 = vmatpush1.bf16.msra.mxu0 %v262
    %280 = vmatprep.subr.bf16.mxu0 0
    %281 = vmatpush1.bf16.msra.mxu0 %v263
    %282 = vmatprep.subr.bf16.mxu0 0
    %283 = vmatpush1.bf16.msra.mxu0 %v264
    %284 = vmatprep.subr.bf16.mxu0 0
    %285 = vmatpush1.bf16.msra.mxu0 %v265
    %286 = vmatprep.subr.bf16.mxu0 0
    %287 = vmatpush1.bf16.msra.mxu0 %v266
    %288 = vmatprep.subr.bf16.mxu0 0
    %289 = vmatpush1.bf16.msra.mxu0 %v267
    %290 = vmatprep.subr.bf16.mxu0 0
    %291 = vmatpush1.bf16.msra.mxu0 %v268
    %292 = vmatprep.subr.bf16.mxu0 0
    %293 = vmatpush1.bf16.msra.mxu0 %v269
    %294 = vmatprep.subr.bf16.mxu0 0
    %295 = vmatpush1.bf16.msra.mxu0 0
    %296 = vmatprep.subr.bf16.mxu0 0
    %297 = vmatpush1.bf16.msra.mxu0 0
    %298 = vmatprep.subr.bf16.mxu0 0
    %299 = vmatpush1.bf16.msra.mxu0 0
    %300 = vmatprep.subr.bf16.mxu0 0
    %301 = vmatpush1.bf16.msra.mxu0 0
    %302 = vmatprep.subr.bf16.mxu0 0
    %303 = vmatpush1.bf16.msra.mxu0 0
    %304 = vmatprep.subr.bf16.mxu0 0
    %305 = vmatpush1.bf16.msra.mxu0 0
    %306 = vmatprep.subr.bf16.mxu0 0
    %307 = vmatpush1.bf16.msra.mxu0 0
    %308 = vmatprep.subr.bf16.mxu0 0
    %309 = vmatpush1.bf16.msra.mxu0 0
    %310 = vmatprep.mubr.bf16.mxu0 0
    %311 = vmatmul.mubr.bf16.gmra.mrb[0].mxu0 %v228
    %v312 = vpop.f32.mrb[0].mxu0
    %v313 = vadd.f32 %v218, %v312
    %v314 = vpop.f32.mrb[0].mxu0
    %v315 = vpop.f32.mrb[0].mxu0
    %v316 = vadd.f32 %v221, %v315
    %v317 = vpop.f32.mrb[0].mxu0
    %318 = vdwg.mxu0
    %v319 = vld [vmem:[%s4] sm:$0x1]
    %v321 = vlaneseq
    %v322 = vshrl.u32 %v321, 7
    %v323 = vsub.s32 0, %v322
    %v324 = vrot.slane %v319, %v323
    %v326 = vadd.f32 %v313, %v324
    %v327 = vadd.f32 %v316, %v324
    %v328 = vmax.f32 %v326, 0.0
    %v329 = vmax.f32 %v327, 0.0
    %v330 = vpack.c.bf16 %v329, %v328
    %v331 = vld [vmem:[#allocation10] sm:$0xf]
    %v332 = vld [vmem:[#allocation10 + $0x4] sm:$0xf]
    %v333 = vld [vmem:[#allocation10 + $0x8] sm:$0xf]
    %v334 = vld [vmem:[#allocation10 + $0xc] sm:$0xf]
    %v335 = vld [vmem:[#allocation10 + $0x10] sm:$0xf]
    %v336 = vld [vmem:[#allocation10 + $0x14] sm:$0xf]
    %v337 = vld [vmem:[#allocation10 + $0x18] sm:$0xf]
    %v338 = vld [vmem:[#allocation10 + $0x1c] sm:$0xf]
    %v339 = vld [vmem:[#allocation10 + $0x20] sm:$0xf]
    %v340 = vld [vmem:[#allocation10 + $0x24] sm:$0xf]
    %v341 = vld [vmem:[#allocation10 + $0x28] sm:$0xf]
    %v342 = vld [vmem:[#allocation10 + $0x2c] sm:$0xf]
    %v343 = vld [vmem:[#allocation10 + $0x30] sm:$0xf]
    %v344 = vld [vmem:[#allocation10 + $0x34] sm:$0xf]
    %v345 = vld [vmem:[#allocation10 + $0x38] sm:$0xf]
    %v346 = vld [vmem:[#allocation10 + $0x3c] sm:$0xf]
    %v363 = vunpack.c.l.b16 %v331
    %v364 = vunpack.c.l.b16 %v332
    %v365 = vunpack.c.l.b16 %v333
    %v366 = vunpack.c.l.b16 %v334
    %v367 = vunpack.c.l.b16 %v335
    %v368 = vunpack.c.l.b16 %v336
    %v369 = vunpack.c.l.b16 %v337
    %v370 = vunpack.c.l.b16 %v338
    %v371 = vunpack.c.l.b16 %v339
    %v372 = vunpack.c.l.b16 %v340
    %v373 = vunpack.c.l.b16 %v341
    %v374 = vunpack.c.l.b16 %v342
    %v375 = vunpack.c.l.b16 %v343
    %v376 = vunpack.c.l.b16 %v344
    %v377 = vunpack.c.l.b16 %v345
    %v378 = vunpack.c.l.b16 %v346
    %v379 = vpack.c.b16 %v364, %v363
    %v380 = vpack.c.b16 %v366, %v365
    %v381 = vpack.c.b16 %v368, %v367
    %v382 = vpack.c.b16 %v370, %v369
    %v383 = vpack.c.b16 %v372, %v371
    %v384 = vpack.c.b16 %v374, %v373
    %v385 = vpack.c.b16 %v376, %v375
    %v386 = vpack.c.b16 %v378, %v377
    %395 = vmatprep.subr.bf16.mxu0 0
    %396 = vmatpush1.bf16.msra.mxu0 %v379
    %397 = vmatprep.subr.bf16.mxu0 0
    %398 = vmatpush1.bf16.msra.mxu0 %v380
    %399 = vmatprep.subr.bf16.mxu0 0
    %400 = vmatpush1.bf16.msra.mxu0 %v381
    %401 = vmatprep.subr.bf16.mxu0 0
    %402 = vmatpush1.bf16.msra.mxu0 %v382
    %403 = vmatprep.subr.bf16.mxu0 0
    %404 = vmatpush1.bf16.msra.mxu0 %v383
    %405 = vmatprep.subr.bf16.mxu0 0
    %406 = vmatpush1.bf16.msra.mxu0 %v384
    %407 = vmatprep.subr.bf16.mxu0 0
    %408 = vmatpush1.bf16.msra.mxu0 %v385
    %409 = vmatprep.subr.bf16.mxu0 0
    %410 = vmatpush1.bf16.msra.mxu0 %v386
    %411 = vmatprep.subr.bf16.mxu0 0
    %412 = vmatpush1.bf16.msra.mxu0 0
    %413 = vmatprep.subr.bf16.mxu0 0
    %414 = vmatpush1.bf16.msra.mxu0 0
    %415 = vmatprep.subr.bf16.mxu0 0
    %416 = vmatpush1.bf16.msra.mxu0 0
    %417 = vmatprep.subr.bf16.mxu0 0
    %418 = vmatpush1.bf16.msra.mxu0 0
    %419 = vmatprep.subr.bf16.mxu0 0
    %420 = vmatpush1.bf16.msra.mxu0 0
    %421 = vmatprep.subr.bf16.mxu0 0
    %422 = vmatpush1.bf16.msra.mxu0 0
    %423 = vmatprep.subr.bf16.mxu0 0
    %424 = vmatpush1.bf16.msra.mxu0 0
    %425 = vmatprep.subr.bf16.mxu0 0
    %426 = vmatpush1.bf16.msra.mxu0 0
    %427 = vmatprep.mubr.bf16.mxu0 0
    %428 = vmatmul.mubr.bf16.gmra.mrb[0].mxu0 %v330
    %v429 = vpop.f32.mrb[0].mxu0
    %v430 = vadd.f32 0.0, %v429
    %v431 = vpop.f32.mrb[0].mxu0
    %v432 = vpop.f32.mrb[0].mxu0
    %v433 = vadd.f32 0.0, %v432
    %v434 = vpop.f32.mrb[0].mxu0
    %435 = vdwg.mxu0
    %436 = vst [vmem:[#allocation11] sm:$0xff] %v430
    %437 = vst [vmem:[#allocation11 + $0x8] sm:$0xff] %v433
    // Predicated region
    $region46: #{tpu_custom_call.1} parent=1 // pred_check
      _
    $region47: #{tpu_custom_call.1} parent=1 // pred_check_branch
      %439 = sbr.rel (0) target = $region49
    $region48: #{tpu_custom_call.1} parent=1 // pred_region
      %s441 = ssub.s32 256, 256
      %442 = vsyncadd [#allocation4], %s441
      %s443 = sshll.u32 [#allocation11], 4
      %s444 = int_to_ptr.vmem [resolvable:$true] %s443
      %449 = dma.vmem_to_hbm [thread:$0]  %s444, 256, %s6, [#allocation4], 128, 128, 8
    $region49: #{tpu_custom_call.1} parent=1 // pred_fallthru
      _
    // Predicated region
    $region50: #{tpu_custom_call.1} parent=1 // pred_check
      _
    $region51: #{tpu_custom_call.1} parent=1 // pred_check_branch
      %451 = sbr.rel (0) target = $region53
    $region52: #{tpu_custom_call.1} parent=1 // pred_region
      %452 = dma.done [#allocation4], 256
    $region53: #{tpu_custom_call.1} parent=1 // pred_fallthru
      _
    %453 = vsyncpa [#allocation3], 1
    %454 = vsyncpa [#allocation6], 1
    %455 = vsyncpa [#allocation9], 1
    %456 = vsyncpa [#allocation4], 1

</llo_original>
